<compile_context>
chip_gen: v7x
topology: tpu7x:2x2x1
jax: 0.10.0
libtpu: 0.0.40
codegen_flags: <defaults>
</compile_context>

<pallas_src>
import numpy as np
import jax
import jax.numpy as jnp
from jax import lax
from jax.experimental import pallas as pl
from jax.experimental.pallas import tpu as pltpu


def _round_up(x, m):
    return (x + m - 1) // m * m


def _vmem_budget():
    """Per-core VMEM we allow the kernel to use (capacity minus headroom)."""
    cap = 64 * 1024 * 1024  # conservative fallback = v7x per-TC VMEM
    try:
        info = pltpu.get_tpu_info()
        cap = int(getattr(info, "vmem_capacity_bytes", cap)) or cap
    except Exception:
        pass
    return min(int(cap * 0.85), cap - 8 * 1024 * 1024)


def _vmem_estimate(tm, tn, bk, in_isz, out_isz):
    return (2 * tm * bk * in_isz        # x tile, double-buffered
            + 2 * bk * tn * in_isz      # W tile, double-buffered
            + 2 * 2 * tn * 4            # scale + shift rows, double-buffered
            + 2 * tm * tn * out_isz     # output tile, double-buffered
            + tm * tn * 4)              # f32 accumulator scratch


def ann_cycle_plan(in_features, out_features, *, compute_dtype=jnp.bfloat16,
                   out_dtype=jnp.float32, tile_m=256):
    """Static tiling plan; depends only on layer sizes / dtypes (not on batch)."""
    in_isz = np.dtype(compute_dtype).itemsize
    out_isz = np.dtype(out_dtype).itemsize
    mult_m = 16 if in_isz < 4 else 8            # bf16 packs 16 sublanes per vreg
    tm = _round_up(max(int(tile_m), mult_m), mult_m)

    budget = _vmem_budget()

    out_p128 = _round_up(out_features, 128)
    if out_p128 <= 1024:
        tn_candidates = [out_p128] + [t for t in (256, 128) if t < out_p128]
    else:
        tn_candidates = [512, 256, 128]

    tn = bk = kp = None
    for cand in tn_candidates:                  # widest N tile that fits with full K
        if _vmem_estimate(tm, cand, in_features, in_isz, out_isz) <= budget:
            tn, bk, kp = cand, in_features, in_features
            break
    if tn is None:                              # K-tiled fallback (huge in_features)
        tn = tn_candidates[-1]
        bk = 256
        while bk * 2 < in_features and \
                _vmem_estimate(tm, tn, bk * 2, in_isz, out_isz) <= budget:
            bk *= 2
        kp = _round_up(in_features, bk)
    out_p = _round_up(out_features, tn)

    est = _vmem_estimate(tm, tn, bk, in_isz, out_isz)
    # v5e default scoped limit is 16 MiB -> always raise past that; cap <= budget.
    vmem_limit = budget if est > 16 * 1024 * 1024 else None

    return dict(tm=tm, tn=tn, bk=bk, kp=kp, out_p=out_p, mult_m=mult_m,
                compute_dtype=compute_dtype, out_dtype=out_dtype,
                vmem_limit=vmem_limit)


def ann_cycle_kernel(x_ref, w_ref, scale_ref, shift_ref, o_ref, acc_ref):
    """One (tm, tn) output tile, K accumulated along grid axis 2 in f32."""
    k = pl.program_id(2)

    @pl.when(k == 0)
    def _init():
        acc_ref[...] = jnp.zeros_like(acc_ref)

    acc_ref[...] += jnp.dot(x_ref[...], w_ref[...],
                            preferred_element_type=jnp.float32)

    @pl.when(k == pl.num_programs(2) - 1)
    def _finalize():
        y = acc_ref[...] * scale_ref[...] + shift_ref[...]   # f32 BN scale + shift
        o_ref[...] = jnp.maximum(y, 0.0).astype(o_ref.dtype)  # ReLU; dropout = id


def ann_cycle_fold(w, b, gamma, beta, running_mean, running_var, eps, plan):
    """Fold Linear bias + eval BatchNorm into (scale, shift) and lay W out lane-dense.

    Weights / BN stats are static for inference: call once, reuse across forwards."""
    f32 = jnp.float32
    out_features, in_features = w.shape
    inv_std = lax.rsqrt(running_var.astype(f32) + eps)
    scale = gamma.astype(f32) * inv_std
    shift = (b.astype(f32) - running_mean.astype(f32)) * scale + beta.astype(f32)

    # W stays unscaled in the compute dtype; `scale` is applied in f32 post-dot.
    wt = w.T.astype(plan["compute_dtype"])                      # [in, out]
    kp, out_p = plan["kp"], plan["out_p"]
    w_p = jnp.zeros((kp, out_p), plan["compute_dtype"]).at[
        :in_features, :out_features].set(wt)
    scale_p = jnp.zeros((1, out_p), f32).at[0, :out_features].set(scale)
    shift_p = jnp.zeros((1, out_p), f32).at[0, :out_features].set(shift)
    return w_p, scale_p, shift_p


def ann_cycle_apply(x, w_p, scale_p, shift_p, *, plan, out_features):
    B, in_features = x.shape
    kp, out_p = w_p.shape
    tn, bk = plan["tn"], plan["bk"]
    mult_m = plan["mult_m"]
    compute_dtype, out_dtype = plan["compute_dtype"], plan["out_dtype"]

    tm = max(mult_m, min(plan["tm"], _round_up(B, mult_m)))

    x_in = x.astype(compute_dtype)
    if kp != in_features:       # only the (rare) K-tiled path pads the contraction dim
        x_in = jnp.zeros((B, kp), compute_dtype).at[:, :in_features].set(x_in)

    grid = (out_p // tn, pl.cdiv(B, tm), kp // bk)   # (N outer, M, K inner)

    cp_kwargs = dict(dimension_semantics=("parallel", "parallel", "arbitrary"))
    if plan["vmem_limit"] is not None:
        cp_kwargs["vmem_limit_bytes"] = int(plan["vmem_limit"])

    out = pl.pallas_call(
        ann_cycle_kernel,
        out_shape=jax.ShapeDtypeStruct((B, out_p), out_dtype),
        grid_spec=pltpu.PrefetchScalarGridSpec(
            num_scalar_prefetch=0,
            grid=grid,
            in_specs=[
                pl.BlockSpec((tm, bk), lambda j, i, k: (i, k)),   # x tile (streams)
                pl.BlockSpec((bk, tn), lambda j, i, k: (k, j)),   # W tile (resident over i)
                pl.BlockSpec((1, tn), lambda j, i, k: (0, j)),    # BN scale (f32)
                pl.BlockSpec((1, tn), lambda j, i, k: (0, j)),    # bias/BN shift (f32)
            ],
            out_specs=pl.BlockSpec((tm, tn), lambda j, i, k: (i, j)),
            scratch_shapes=[pltpu.VMEM((tm, tn), jnp.float32)],
        ),
        compiler_params=pltpu.CompilerParams(**cp_kwargs),
    )(x_in, w_p, scale_p, shift_p)

    return out[:, :out_features]


def ann_cycle_forward(x, w, b, gamma, beta, running_mean, running_var, eps=1e-5, *,
                      tile_m=256, compute_dtype=jnp.bfloat16, out_dtype=jnp.float32):
    """Convenience one-shot path (for serving, hoist fold() out of the hot loop)."""
    out_features, in_features = w.shape
    plan = ann_cycle_plan(in_features, out_features, compute_dtype=compute_dtype,
                          out_dtype=out_dtype, tile_m=tile_m)
    folded = ann_cycle_fold(w, b, gamma, beta, running_mean, running_var, eps, plan)
    return ann_cycle_apply(x, *folded, plan=plan, out_features=out_features)


def ann_cycle_reference(x, w, b, gamma, beta, running_mean, running_var, eps=1e-5):
    y = x @ w.T + b
    y = gamma * (y - running_mean) / jnp.sqrt(running_var + eps) + beta
    return jnp.maximum(y, 0.0)


if __name__ == "__main__":
    key = jax.random.PRNGKey(0)
    in_features, out_features = 32, 64

    k_x, k_w, k_b, k_g, k_be, k_rm, k_rv, k_x2 = jax.random.split(key, 8)
    w = jax.random.normal(k_w, (out_features, in_features), dtype=jnp.float32) * 0.1
    b = jax.random.normal(k_b, (out_features,), dtype=jnp.float32) * 0.1
    gamma = 1.0 + 0.1 * jax.random.normal(k_g, (out_features,), dtype=jnp.float32)
    beta = 0.1 * jax.random.normal(k_be, (out_features,), dtype=jnp.float32)
    running_mean = 0.1 * jax.random.normal(k_rm, (out_features,), dtype=jnp.float32)
    running_var = jnp.abs(1.0 + 0.1 * jax.random.normal(k_rv, (out_features,),
                                                        dtype=jnp.float32))

    # --- case 1: small batch, f32 MXU path ------------------------------------
    B = 8
    x = jax.random.normal(k_x, (B, in_features), dtype=jnp.float32)
    plan32 = ann_cycle_plan(in_features, out_features,
                            compute_dtype=jnp.float32, out_dtype=jnp.float32)
    folded32 = ann_cycle_fold(w, b, gamma, beta, running_mean, running_var,
                              1e-5, plan32)
    out1 = ann_cycle_apply(x, *folded32, plan=plan32, out_features=out_features)
    out1 = jax.block_until_ready(out1)
    ref1 = ann_cycle_reference(x, w, b, gamma, beta, running_mean, running_var)
    assert out1.shape == (B, out_features)
    assert jnp.allclose(out1, ref1, atol=5e-3, rtol=5e-3), "f32 mismatch vs reference"

    # --- case 2: ragged batch (partial M tile), bf16 path, fold hoisted once ---
    B2 = 200
    x2 = jax.random.normal(k_x2, (B2, in_features), dtype=jnp.float32)
    plan_bf = ann_cycle_plan(in_features, out_features, compute_dtype=jnp.bfloat16,
                             out_dtype=jnp.bfloat16, tile_m=64)
    folded_bf = ann_cycle_fold(w, b, gamma, beta, running_mean, running_var,
                               1e-5, plan_bf)
    out2 = ann_cycle_apply(x2, *folded_bf, plan=plan_bf, out_features=out_features)
    out2 = jax.block_until_ready(out2)
    ref2 = ann_cycle_reference(x2, w, b, gamma, beta, running_mean, running_var)
    assert out2.shape == (B2, out_features)
    assert jnp.allclose(out2.astype(jnp.float32), ref2, atol=5e-2, rtol=5e-2), \
        "bf16 mismatch vs reference"

    print("KERNEL_OK")
</pallas_src>

<mosaic_0001>
module attributes {stable_mosaic.version = 11 : i64} {
  func.func @ann_cycle_kernel(%arg0: i32, %arg1: i32, %arg2: i32, %arg3: memref<8x32xf32, #tpu.memory_space<vmem>>, %arg4: memref<32x128xf32, #tpu.memory_space<vmem>>, %arg5: memref<1x128xf32, #tpu.memory_space<vmem>>, %arg6: memref<1x128xf32, #tpu.memory_space<vmem>>, %arg7: memref<8x128xf32, #tpu.memory_space<vmem>>, %arg8: memref<8x128xf32, #tpu.memory_space<vmem>>) attributes {dimension_semantics = [#tpu.dimension_semantics<parallel>, #tpu.dimension_semantics<parallel>, #tpu.dimension_semantics<arbitrary>], iteration_bounds = array<i64: 1, 1, 1>, scalar_prefetch = 0 : i64, scratch_operands = 1 : i64, tpu.core_type = #tpu.core_type<tc>, window_params = [{transform_indices = @transform_0, window_bounds = array<i64: 8, 32>}, {transform_indices = @transform_1, window_bounds = array<i64: 32, 128>}, {transform_indices = @transform_2, window_bounds = array<i64: 1, 128>}, {transform_indices = @transform_3, window_bounds = array<i64: 1, 128>}, {transform_indices = @transform_4, window_bounds = array<i64: 8, 128>}]} {
    %c0_i32 = arith.constant 0 : i32
    %0 = arith.cmpi eq, %arg2, %c0_i32 : i32
    %1 = arith.extui %0 : i1 to i32
    %c0_i32_0 = arith.constant 0 : i32
    %2 = arith.cmpi ne, %1, %c0_i32_0 : i32
    scf.if %2 {
      %cst_10 = arith.constant 0.000000e+00 : f32
      %12 = vector.broadcast %cst_10 : f32 to vector<8x128xf32>
      %c0_11 = arith.constant 0 : index
      %c0_12 = arith.constant 0 : index
      %13 = vector.load %arg8[%c0_11, %c0_12] : memref<8x128xf32, #tpu.memory_space<vmem>>, vector<8x128xf32>
      tpu.vector_store %arg8[%c0_11, %c0_12], %12 {strides = array<i32>} : memref<8x128xf32, #tpu.memory_space<vmem>>, vector<8x128xf32>,
    } else {
    }
    %c0 = arith.constant 0 : index
    %c0_1 = arith.constant 0 : index
    %3 = vector.load %arg8[%c0, %c0_1] : memref<8x128xf32, #tpu.memory_space<vmem>>, vector<8x128xf32>
    %c0_2 = arith.constant 0 : index
    %c0_3 = arith.constant 0 : index
    %4 = vector.load %arg3[%c0_2, %c0_3] : memref<8x32xf32, #tpu.memory_space<vmem>>, vector<8x32xf32>
    %c0_4 = arith.constant 0 : index
    %c0_5 = arith.constant 0 : index
    %5 = vector.load %arg4[%c0_4, %c0_5] : memref<32x128xf32, #tpu.memory_space<vmem>>, vector<32x128xf32>
    %cst = arith.constant dense<0.000000e+00> : vector<8x128xf32>
    %6 = tpu.matmul %4, %5, %cst {dimension_numbers = #tpu.dot_dimension_numbers<[1], [0], [0], [1], [0, 0, 1, 1], [], []>} : vector<8x32xf32>, vector<32x128xf32>, vector<8x128xf32> -> vector<8x128xf32>
    %7 = arith.addf %3, %6 : vector<8x128xf32>
    %c0_6 = arith.constant 0 : index
    %c0_7 = arith.constant 0 : index
    %8 = vector.load %arg8[%c0_6, %c0_7] : memref<8x128xf32, #tpu.memory_space<vmem>>, vector<8x128xf32>
    tpu.vector_store %arg8[%c0_6, %c0_7], %7 {strides = array<i32>} : memref<8x128xf32, #tpu.memory_space<vmem>>, vector<8x128xf32>,
    %c0_i32_8 = arith.constant 0 : i32
    %9 = arith.cmpi eq, %arg2, %c0_i32_8 : i32
    %10 = arith.extui %9 : i1 to i32
    %c0_i32_9 = arith.constant 0 : i32
    %11 = arith.cmpi ne, %10, %c0_i32_9 : i32
    scf.if %11 {
      %c0_10 = arith.constant 0 : index
      %c0_11 = arith.constant 0 : index
      %12 = vector.load %arg8[%c0_10, %c0_11] : memref<8x128xf32, #tpu.memory_space<vmem>>, vector<8x128xf32>
      %c0_12 = arith.constant 0 : index
      %c0_13 = arith.constant 0 : index
      %13 = vector.load %arg5[%c0_12, %c0_13] : memref<1x128xf32, #tpu.memory_space<vmem>>, vector<1x128xf32>
      %14 = vector.broadcast %13 : vector<1x128xf32> to vector<8x128xf32>
      %15 = arith.mulf %12, %14 : vector<8x128xf32>
      %c0_14 = arith.constant 0 : index
      %c0_15 = arith.constant 0 : index
      %16 = vector.load %arg6[%c0_14, %c0_15] : memref<1x128xf32, #tpu.memory_space<vmem>>, vector<1x128xf32>
      %17 = vector.broadcast %16 : vector<1x128xf32> to vector<8x128xf32>
      %18 = arith.addf %15, %17 : vector<8x128xf32>
      %cst_16 = arith.constant 0.000000e+00 : f32
      %19 = vector.broadcast %cst_16 : f32 to vector<8x128xf32>
      %20 = arith.maximumf %18, %19 : vector<8x128xf32>
      %c0_17 = arith.constant 0 : index
      %c0_18 = arith.constant 0 : index
      %21 = vector.load %arg7[%c0_17, %c0_18] : memref<8x128xf32, #tpu.memory_space<vmem>>, vector<8x128xf32>
      tpu.vector_store %arg7[%c0_17, %c0_18], %20 {strides = array<i32>} : memref<8x128xf32, #tpu.memory_space<vmem>>, vector<8x128xf32>,
    } else {
    }
    return
  }
  func.func @transform_0(%arg0: i32, %arg1: i32, %arg2: i32) -> (i32, i32) {
    %c0_i32 = arith.constant 0 : i32
    return %arg1, %arg2 : i32, i32
  }
  func.func @transform_1(%arg0: i32, %arg1: i32, %arg2: i32) -> (i32, i32) {
    %c0_i32 = arith.constant 0 : i32
    return %arg2, %arg0 : i32, i32
  }
  func.func @transform_2(%arg0: i32, %arg1: i32, %arg2: i32) -> (i32, i32) {
    %c0_i32 = arith.constant 0 : i32
    %c0_i32_0 = arith.constant 0 : i32
    return %c0_i32, %arg0 : i32, i32
  }
  func.func @transform_3(%arg0: i32, %arg1: i32, %arg2: i32) -> (i32, i32) {
    %c0_i32 = arith.constant 0 : i32
    %c0_i32_0 = arith.constant 0 : i32
    return %c0_i32, %arg0 : i32, i32
  }
  func.func @transform_4(%arg0: i32, %arg1: i32, %arg2: i32) -> (i32, i32) {
    %c0_i32 = arith.constant 0 : i32
    return %arg1, %arg0 : i32, i32
  }
}

</mosaic_0001>

<llo_original>
// kernel: tpu_custom_call.1
$region0: #{tpu_custom_call.1}
  #allocation0 [shape = 'u32[]', space=smem, size = 0x4, offset = 0x4, fixed_abs, tag = 'smem constant byte address 0x4 - core index']
  #allocation1 [shape = 'u32[144,128]{1,0:T(1,128)}', space=vmem, size = 0x12000, scoped, tag = 'internal scratch']
  #allocation2 [shape = 'f32[8,128]{1,0:T(8,128)}', space=vmem, size = 0x1000, scoped, tag = 'scratch operand']
  %s0 = inlined_call_operand.hbm [shape: f32[8,32], index: 0, kind: input, shape index: {}]
  %s1 = inlined_call_operand.hbm [shape: f32[32,128], index: 1, kind: input, shape index: {}]
  %s2 = inlined_call_operand.vmem [shape: f32[1,128], index: 2, kind: input, shape index: {}]
  %s3 = inlined_call_operand.vmem [shape: f32[1,128], index: 3, kind: input, shape index: {}]
  %s4 = inlined_call_operand.hbm [shape: f32[8,128], index: 4, kind: output, shape index: {}]
  %s5 = sld [smem:[#allocation0]]
  $region42: #{tpu_custom_call.1} parent=0
    _
  %s7 = ssub.s32 1, %s5
  %s8 = scalar_select 0, %s7, %s5
  $region1: #{tpu_custom_call.1} parent=0
    #allocation3 [shape = 'u8[4096]{0}', space=vmem, size = 0x1000, scoped, tag = 'input window, operand 0, single buffered']
    #allocation4 [shape = 's32[1]{0}', space=sflag, size = 0x4, scoped, tag = 'scoped memory for tpu_custom_call.1']
    #allocation5 [shape = 's32[1]{0}', space=sflag, size = 0x4, scoped, tag = 'scoped memory for tpu_custom_call.1']
    #allocation6 [shape = 'u8[16384]{0}', space=vmem, size = 0x4000, scoped, tag = 'input window, operand 1, single buffered']
    #allocation7 [shape = 's32[1]{0}', space=sflag, size = 0x4, scoped, tag = 'scoped memory for tpu_custom_call.1']
    #allocation8 [shape = 'u8[4096]{0}', space=vmem, size = 0x1000, scoped, tag = 'output window, operand 0, single buffered']
    %9 = vsyncpa [#allocation4], 0
    %10 = vsyncpa [#allocation7], 0
    %11 = vsyncpa [#allocation5], 0
    // Predicated region
    $region2: #{tpu_custom_call.1} parent=1 // pred_check
      _
    $region3: #{tpu_custom_call.1} parent=1 // pred_check_branch
      %13 = sbr.rel (0) target = $region5
    $region4: #{tpu_custom_call.1} parent=1 // pred_region
      %s15 = ssub.s32 128, 128
      %16 = vsyncadd [#allocation4], %s15
      %s18 = sshll.u32 [#allocation3], 4
      %s19 = int_to_ptr.vmem [resolvable:$true] %s18
      %21 = dma.hbm_to_vmem [thread:$0]  %s0, 128, %s19, [#allocation4]
    $region5: #{tpu_custom_call.1} parent=1 // pred_fallthru
      _
    // Predicated region
    $region6: #{tpu_custom_call.1} parent=1 // pred_check
      _
    $region7: #{tpu_custom_call.1} parent=1 // pred_check_branch
      %23 = sbr.rel (0) target = $region9
    $region8: #{tpu_custom_call.1} parent=1 // pred_region
      %s25 = ssub.s32 512, 512
      %26 = vsyncadd [#allocation7], %s25
      %s27 = sshll.u32 [#allocation6], 4
      %s28 = int_to_ptr.vmem [resolvable:$true] %s27
      %33 = dma.hbm_to_vmem [thread:$0]  %s1, 512, %s28, [#allocation7], 128, 128, 8
    $region9: #{tpu_custom_call.1} parent=1 // pred_fallthru
      _
    // Predicated region
    $region10: #{tpu_custom_call.1} parent=1 // pred_check
      _
    $region11: #{tpu_custom_call.1} parent=1 // pred_check_branch
      %35 = sbr.rel (0) target = $region13
    $region12: #{tpu_custom_call.1} parent=1 // pred_region
      _
    $region13: #{tpu_custom_call.1} parent=1 // pred_fallthru
      _
    // Predicated region
    $region14: #{tpu_custom_call.1} parent=1 // pred_check
      _
    $region15: #{tpu_custom_call.1} parent=1 // pred_check_branch
      %37 = sbr.rel (0) target = $region17
    $region16: #{tpu_custom_call.1} parent=1 // pred_region
      _
    $region17: #{tpu_custom_call.1} parent=1 // pred_fallthru
      _
    // Predicated region
    $region18: #{tpu_custom_call.1} parent=1 // pred_check
      _
    $region19: #{tpu_custom_call.1} parent=1 // pred_check_branch
      %39 = sbr.rel (0) target = $region21
    $region20: #{tpu_custom_call.1} parent=1 // pred_region
      %40 = dma.done [#allocation4], 128
    $region21: #{tpu_custom_call.1} parent=1 // pred_fallthru
      _
    // Predicated region
    $region22: #{tpu_custom_call.1} parent=1 // pred_check
      _
    $region23: #{tpu_custom_call.1} parent=1 // pred_check_branch
      %42 = sbr.rel (0) target = $region25
    $region24: #{tpu_custom_call.1} parent=1 // pred_region
      %43 = dma.done [#allocation7], 512
    $region25: #{tpu_custom_call.1} parent=1 // pred_fallthru
      _
    %p44 = scmp.eq.s32.totalorder 0, 0
    // Predicated region
    $region26: #{tpu_custom_call.1} parent=1 // pred_check
      %p45 = pneg %p44
    $region27: #{tpu_custom_call.1} parent=1 // pred_check_branch
      %47 = sbr.rel (%p45) target = $region29
    $region28: #{tpu_custom_call.1} parent=1 // pred_region
      %48 = vst [vmem:[#allocation2] sm:$0xff] 0.0
    $region29: #{tpu_custom_call.1} parent=1 // pred_fallthru
      _
    %v49 = vld [vmem:[#allocation2] sm:$0xff]
    %v50 = vld [vmem:[#allocation3] sm:$0xff]
    %v51 = vld [vmem:[#allocation6] sm:$0xff]
    %v52 = vld [vmem:[#allocation6 + $0x8] sm:$0xff]
    %v53 = vld [vmem:[#allocation6 + $0x10] sm:$0xff]
    %v54 = vld [vmem:[#allocation6 + $0x18] sm:$0xff]
    %vm55 = vcmask 261120
    %v57 = vsel %vm55, %v50, 0
    %59 = vmatprep.subr.mxu0 0.0
    %60 = vmatpush1.msra.mxu0 %v51
    %61 = vmatprep.subr.mxu0 0.0
    %62 = vmatpush1.msra.mxu0 %v52
    %63 = vmatprep.subr.mxu0 0.0
    %64 = vmatpush1.msra.mxu0 %v53
    %65 = vmatprep.subr.mxu0 0.0
    %66 = vmatpush1.msra.mxu0 %v54
    %67 = vmatprep.subr.mxu0 0.0
    %68 = vmatpush1.msra.mxu0 0.0
    %69 = vmatprep.subr.mxu0 0.0
    %70 = vmatpush1.msra.mxu0 0.0
    %71 = vmatprep.subr.mxu0 0.0
    %72 = vmatpush1.msra.mxu0 0.0
    %73 = vmatprep.subr.mxu0 0.0
    %74 = vmatpush1.msra.mxu0 0.0
    %75 = vmatprep.subr.mxu0 0.0
    %76 = vmatpush1.msra.mxu0 0.0
    %77 = vmatprep.subr.mxu0 0.0
    %78 = vmatpush1.msra.mxu0 0.0
    %79 = vmatprep.subr.mxu0 0.0
    %80 = vmatpush1.msra.mxu0 0.0
    %81 = vmatprep.subr.mxu0 0.0
    %82 = vmatpush1.msra.mxu0 0.0
    %83 = vmatprep.subr.mxu0 0.0
    %84 = vmatpush1.msra.mxu0 0.0
    %85 = vmatprep.subr.mxu0 0.0
    %86 = vmatpush1.msra.mxu0 0.0
    %87 = vmatprep.subr.mxu0 0.0
    %88 = vmatpush1.msra.mxu0 0.0
    %89 = vmatprep.subr.mxu0 0.0
    %90 = vmatpush1.msra.mxu0 0.0
    %91 = vmatprep.subr.mxu0 0.0
    %92 = vmatpush1.msra.mxu0 0.0
    %93 = vmatprep.subr.mxu0 0.0
    %94 = vmatpush1.msra.mxu0 0.0
    %95 = vmatprep.subr.mxu0 0.0
    %96 = vmatpush1.msra.mxu0 0.0
    %97 = vmatprep.subr.mxu0 0.0
    %98 = vmatpush1.msra.mxu0 0.0
    %99 = vmatprep.subr.mxu0 0.0
    %100 = vmatpush1.msra.mxu0 0.0
    %101 = vmatprep.subr.mxu0 0.0
    %102 = vmatpush1.msra.mxu0 0.0
    %103 = vmatprep.subr.mxu0 0.0
    %104 = vmatpush1.msra.mxu0 0.0
    %105 = vmatprep.subr.mxu0 0.0
    %106 = vmatpush1.msra.mxu0 0.0
    %107 = vmatprep.subr.mxu0 0.0
    %108 = vmatpush1.msra.mxu0 0.0
    %109 = vmatprep.subr.mxu0 0.0
    %110 = vmatpush1.msra.mxu0 0.0
    %111 = vmatprep.subr.mxu0 0.0
    %112 = vmatpush1.msra.mxu0 0.0
    %113 = vmatprep.subr.mxu0 0.0
    %114 = vmatpush1.msra.mxu0 0.0
    %115 = vmatprep.subr.mxu0 0.0
    %116 = vmatpush1.msra.mxu0 0.0
    %117 = vmatprep.subr.mxu0 0.0
    %118 = vmatpush1.msra.mxu0 0.0
    %119 = vmatprep.subr.mxu0 0.0
    %120 = vmatpush1.msra.mxu0 0.0
    %121 = vmatprep.subr.mxu0 0.0
    %122 = vmatpush1.msra.mxu0 0.0
    %123 = vmatprep.mubr.f32.mxu0 0.0
    %124 = vmatmul.mubr.f32.gmra.mrb[0].mxu0 %v57
    %v125 = vpop.f32.mrb[0].mxu0
    %v126 = vadd.f32 0.0, %v125
    %v127 = vpop.f32.mrb[0].mxu0
    %128 = vdwg.mxu0
    %v129 = vadd.f32 %v49, %v126
    %130 = vst [vmem:[#allocation2] sm:$0xff] %v129
    // Predicated region
    $region30: #{tpu_custom_call.1} parent=1 // pred_check
      %p131 = pneg %p44
    $region31: #{tpu_custom_call.1} parent=1 // pred_check_branch
      %133 = sbr.rel (%p131) target = $region33
    $region32: #{tpu_custom_call.1} parent=1 // pred_region
      %v134 = vld [vmem:[#allocation2] sm:$0xff]
      %v135 = vld [vmem:[%s2] sm:$0x1]
      %v137 = vlaneseq
      %v138 = vshrl.u32 %v137, 7
      %v139 = vsub.s32 0, %v138
      %v140 = vrot.slane %v135, %v139
      %v142 = vmul.f32 %v134, %v140
      %v143 = vld [vmem:[%s3] sm:$0x1]
      %v145 = vlaneseq
      %v146 = vshrl.u32 %v145, 7
      %v147 = vsub.s32 0, %v146
      %v148 = vrot.slane %v143, %v147
      %v150 = vadd.f32 %v142, %v148
      %v151 = vmax.f32 %v150, 0.0
      %152 = vst [vmem:[#allocation8] sm:$0xff] %v151
    $region33: #{tpu_custom_call.1} parent=1 // pred_fallthru
      _
    // Predicated region
    $region34: #{tpu_custom_call.1} parent=1 // pred_check
      _
    $region35: #{tpu_custom_call.1} parent=1 // pred_check_branch
      %154 = sbr.rel (0) target = $region37
    $region36: #{tpu_custom_call.1} parent=1 // pred_region
      %s156 = ssub.s32 128, 128
      %157 = vsyncadd [#allocation5], %s156
      %s159 = sshll.u32 [#allocation8], 4
      %s160 = int_to_ptr.vmem [resolvable:$true] %s159
      %162 = dma.vmem_to_hbm [thread:$0]  %s160, 128, %s4, [#allocation5]
    $region37: #{tpu_custom_call.1} parent=1 // pred_fallthru
      _
    // Predicated region
    $region38: #{tpu_custom_call.1} parent=1 // pred_check
      _
    $region39: #{tpu_custom_call.1} parent=1 // pred_check_branch
      %164 = sbr.rel (0) target = $region41
    $region40: #{tpu_custom_call.1} parent=1 // pred_region
      %165 = dma.done [#allocation5], 128
    $region41: #{tpu_custom_call.1} parent=1 // pred_fallthru
      _
    %166 = vsyncpa [#allocation4], 1
    %167 = vsyncpa [#allocation7], 1
    %168 = vsyncpa [#allocation5], 1

</llo_original>
